<compile_context>
chip_gen: v7x
topology: tpu7x:2x2x1
jax: 0.10.0
libtpu: 0.0.40
codegen_flags: <defaults>
</compile_context>

<pallas_src>
import functools

import jax
import jax.numpy as jnp
from jax.experimental import pallas as pl
from jax.experimental.pallas import tpu as pltpu

_LANE = 128
_SUBLANE = 8


def _round_up(v, m):
    return -(-v // m) * m


def _vmem_capacity_bytes():
    """Physical VMEM per TensorCore; conservative 64 MiB fallback (v7x size)."""
    try:
        info = pltpu.get_tpu_info()
        cap = getattr(info, "vmem_capacity_bytes", None)
        if cap:
            return int(cap)
    except Exception:
        pass
    return 64 * 1024 * 1024


# --------------------------------------------------------------------------
# Kernels
# --------------------------------------------------------------------------
def _se_fz_fused_kernel(x_ref, w1_ref, b1_ref, w2_ref, b2_ref, o_ref, *, inv_hw):
    """One batch slab per grid step: pool -> fc1(+BN) -> relu -> fc2 -> sigmoid -> scale."""
    x = x_ref[...]                                                  # (1, C, HW)
    # f32 accumulation without materializing an f32 copy of the slab.
    pooled = jnp.sum(x, axis=-1, dtype=jnp.float32) * inv_hw        # (1, C)
    y = jnp.dot(pooled, w1_ref[...],
                preferred_element_type=jnp.float32) + b1_ref[...]
    y = jnp.maximum(y, 0.0)
    z = jnp.dot(y, w2_ref[...],
                preferred_element_type=jnp.float32) + b2_ref[...]
    s = jax.nn.sigmoid(z).astype(x.dtype)                           # (1, C)
    o_ref[...] = x * s[:, :, None]


def _se_fz_pool_kernel(x_ref, pooled_ref, *, hw, hw_tile, needs_mask):
    """Phase 1: accumulate the spatial sum across HW tiles into the (1, C, 1) output block."""
    k = pl.program_id(1)

    @pl.when(k == 0)
    def _():
        pooled_ref[...] = jnp.zeros_like(pooled_ref)

    x = x_ref[...]                                                  # (1, C, hw_tile)
    if needs_mask:
        # Ragged tail: out-of-bounds lanes of the last (partial) block hold
        # garbage -> zero them before reducing.
        pos = k * hw_tile + jax.lax.broadcasted_iota(jnp.int32, x.shape, 2)
        x = jnp.where(pos < hw, x, jnp.zeros_like(x))
    pooled_ref[...] += jnp.sum(x, axis=-1, dtype=jnp.float32)[:, :, None]


def _se_fz_scale_kernel(gate_ref, x_ref, o_ref):
    """Phase 2: out = x * gate.  Partial last blocks are clipped by Pallas on store."""
    x = x_ref[...]                                                  # (1, C, hw_tile)
    o_ref[...] = x * gate_ref[...].astype(x.dtype)                  # gate: (1, C, 1)


# --------------------------------------------------------------------------
# Wrapper
# --------------------------------------------------------------------------
def se_fz(x_nchw, params, *, eps=1e-5, hw_tile=None, force_two_phase=False,
          donate_input=False):
    """SE_fz forward: out = x * sigmoid(fc2(relu(bn(fc1(avgpool(x)))))).

    x_nchw: (N, C, H, W); output has the same shape and dtype.
    """
    N, C, H, W = x_nchw.shape
    hw = H * W
    med = params["w1"].shape[0]

    # ---- fold eval-mode BatchNorm1d into fc1 (wrapper-time, tiny) ----
    bn_scale = params["gamma"] * jax.lax.rsqrt(params["rvar"] + eps)        # (med,)
    w1f = (params["w1"] * bn_scale[:, None]).T.astype(jnp.float32)          # (C, med)
    b1f = ((params["b1"] - params["rmean"]) * bn_scale
           + params["beta"])[None, :].astype(jnp.float32)                   # (1, med)
    w2t = params["w2"].T.astype(jnp.float32)                                # (med, C)
    b2 = params["b2"][None, :].astype(jnp.float32)                          # (1, C)
    weight_bytes = 4 * (2 * C * med + med + C)

    x = x_nchw.reshape(N, C, hw)          # free (contiguous dims), keeps dtype

    # ---- per-generation VMEM budget ----
    vmem_cap = _vmem_capacity_bytes()
    vmem_limit = (vmem_cap // 8) * 7                      # 112 MiB v5e/v6e, 56 MiB v7x

    itemsize = jnp.dtype(x.dtype).itemsize
    pack = max(1, 4 // itemsize)
    c_pad = _round_up(C, _SUBLANE * pack)                 # sublane (+packing) padding
    hw_lane = _round_up(hw, _LANE)                        # lane padding of a VMEM tile

    # Fused path keeps 2x input slab + 2x output slab resident (double buffered).
    slab_bytes = c_pad * hw_lane * itemsize
    fused_vmem = 4 * slab_bytes + weight_bytes
    if itemsize < 4:
        fused_vmem += _round_up(C, _SUBLANE) * hw_lane * 4   # possible f32 reduce temp
    two_phase = (force_two_phase
                 or fused_vmem > vmem_limit - (4 << 20)
                 # Single-step grids cannot pipeline (and leave a v7x TC idle);
                 # prefer the tiled path when the slab is big enough to split.
                 or (N == 1 and slab_bytes > (8 << 20)))

    if not two_phase:
        # ---------------- fused single-pass path (2 HBM passes) ----------------
        # Block is the full (C, hw) extent -> no padding, no masking needed;
        # non-128-multiple hw only costs masked partial stores, not HBM passes.
        out = pl.pallas_call(
            functools.partial(_se_fz_fused_kernel, inv_hw=1.0 / hw),
            out_shape=jax.ShapeDtypeStruct((N, C, hw), x.dtype),
            grid=(N,),
            in_specs=[
                pl.BlockSpec((1, C, hw), lambda n: (n, 0, 0)),
                pl.BlockSpec((C, med), lambda n: (0, 0)),
                pl.BlockSpec((1, med), lambda n: (0, 0)),
                pl.BlockSpec((med, C), lambda n: (0, 0)),
                pl.BlockSpec((1, C), lambda n: (0, 0)),
            ],
            out_specs=pl.BlockSpec((1, C, hw), lambda n: (n, 0, 0)),
            input_output_aliases=({0: 0} if donate_input else {}),
            compiler_params=pltpu.CompilerParams(
                dimension_semantics=("parallel",),
                vmem_limit_bytes=int(vmem_limit)),
        )(x, w1f, b1f, w2t, b2)
        return out.reshape(N, C, H, W)

    # ---------------- two-phase (large H*W / tight VMEM / tiny N) path ----------------
    # Phase 2 holds 2x (x tile) + 2x (out tile); keep tiles ~8 MiB for HBM roofline.
    tile_budget = min(8 << 20, max(1 << 20, (vmem_limit - (8 << 20)) // 5))
    if hw_tile is None:
        hw_tile = max(_LANE, (tile_budget // (c_pad * itemsize)) // _LANE * _LANE)
    hw_tile = _round_up(hw_tile, _LANE)
    hw_tile = min(hw_tile, _round_up(hw, _LANE))
    n_tiles = pl.cdiv(hw, hw_tile)
    needs_mask = (hw % hw_tile) != 0

    # Phase 1: per-(n, c) spatial sums.  HW is the reduction axis -> last, "arbitrary".
    pooled = pl.pallas_call(
        functools.partial(_se_fz_pool_kernel, hw=hw, hw_tile=hw_tile,
                          needs_mask=needs_mask),
        out_shape=jax.ShapeDtypeStruct((N, C, 1), jnp.float32),
        grid=(N, n_tiles),
        in_specs=[pl.BlockSpec((1, C, hw_tile), lambda n, k: (n, 0, k))],
        out_specs=pl.BlockSpec((1, C, 1), lambda n, k: (n, 0, 0)),
        compiler_params=pltpu.CompilerParams(
            dimension_semantics=("parallel", "arbitrary"),
            vmem_limit_bytes=int(vmem_limit)),
    )(x)

    # Gate: one well-shaped batched matmul over N in plain JAX (tiny, N x C).
    p = pooled[:, :, 0] * (1.0 / hw)                                  # (N, C) f32
    y = jnp.maximum(p @ w1f + b1f, 0.0)                               # (N, med)
    gate = jax.nn.sigmoid(y @ w2t + b2)[:, :, None]                   # (N, C, 1) f32

    # Phase 2: stream x again and scale.  Fully parallel; partial tail store is
    # clipped by Pallas (no wrapper pad / slice).
    out = pl.pallas_call(
        _se_fz_scale_kernel,
        out_shape=jax.ShapeDtypeStruct((N, C, hw), x.dtype),
        grid=(N, n_tiles),
        in_specs=[
            pl.BlockSpec((1, C, 1), lambda n, k: (n, 0, 0)),
            pl.BlockSpec((1, C, hw_tile), lambda n, k: (n, 0, k)),
        ],
        out_specs=pl.BlockSpec((1, C, hw_tile), lambda n, k: (n, 0, k)),
        compiler_params=pltpu.CompilerParams(
            dimension_semantics=("parallel", "parallel"),
            vmem_limit_bytes=int(vmem_limit)),
    )(gate, x)
    return out.reshape(N, C, H, W)


# --------------------------------------------------------------------------
# Parameters / reference
# --------------------------------------------------------------------------
def init_params(key, in_channels, med_channels):
    """Deterministic synthetic parameters (PyTorch-like uniform fan-in init)."""
    k = jax.random.split(key, 6)
    lim1 = 1.0 / jnp.sqrt(in_channels)
    lim2 = 1.0 / jnp.sqrt(med_channels)
    return {
        # nn.Linear(in_channels, med_channels): weight (med, in), bias (med,)
        "w1": jax.random.uniform(k[0], (med_channels, in_channels),
                                 jnp.float32, -lim1, lim1),
        "b1": jax.random.uniform(k[1], (med_channels,),
                                 jnp.float32, -lim1, lim1),
        # nn.BatchNorm1d(med_channels)
        "gamma": jnp.ones((med_channels,), jnp.float32),
        "beta": jnp.zeros((med_channels,), jnp.float32),
        "rmean": 0.1 * jax.random.normal(k[2], (med_channels,), jnp.float32),
        "rvar": 1.0 + 0.1 * jax.random.uniform(k[3], (med_channels,),
                                               jnp.float32),
        # nn.Linear(med_channels, in_channels): weight (in, med), bias (in,)
        "w2": jax.random.uniform(k[4], (in_channels, med_channels),
                                 jnp.float32, -lim2, lim2),
        "b2": jax.random.uniform(k[5], (in_channels,),
                                 jnp.float32, -lim2, lim2),
    }


def se_fz_reference(x_nchw, params, eps=1e-5):
    """Pure-JAX reference for correctness checking (eval-mode BN)."""
    pooled = jnp.mean(x_nchw, axis=(2, 3))                      # (N, C)
    y = pooled @ params["w1"].T + params["b1"]
    y = ((y - params["rmean"]) / jnp.sqrt(params["rvar"] + eps)
         * params["gamma"] + params["beta"])
    y = jnp.maximum(y, 0.0)
    z = y @ params["w2"].T + params["b2"]
    s = jax.nn.sigmoid(z)
    return x_nchw * s[:, :, None, None]


if __name__ == "__main__":
    N, C, H, W = 2, 4, 16, 16
    MED = 8

    key = jax.random.PRNGKey(0)
    kx, kp, kx2 = jax.random.split(key, 3)
    x = jax.random.normal(kx, (N, C, H, W), jnp.float32)
    params = init_params(kp, C, MED)

    # Fused single-pass path (small per-batch slab, lane-aligned HW).
    out = jax.block_until_ready(se_fz(x, params))
    ref = se_fz_reference(x, params)
    assert out.shape == (N, C, H, W) and out.dtype == x.dtype
    assert jnp.allclose(out, ref, atol=1e-5, rtol=1e-5), "fused path mismatch"

    # Fused path with a non-128-multiple H*W (24*24=576): full-extent block,
    # Pallas masks the partial stores -- no wrapper pad/slice.
    x2 = jax.random.normal(kx2, (N, C, 24, 24), jnp.float32)
    ref2 = se_fz_reference(x2, params)
    out2 = jax.block_until_ready(se_fz(x2, params))
    assert out2.shape == x2.shape and out2.dtype == x2.dtype
    assert jnp.allclose(out2, ref2, atol=1e-5, rtol=1e-5), "fused ragged mismatch"

    # Two-phase fallback (large-HW / tight-VMEM) with a ragged last tile
    # (576 = 2*256 + 64) to exercise the in-kernel tail masking + clipped store.
    out3 = jax.block_until_ready(
        se_fz(x2, params, force_two_phase=True, hw_tile=256))
    assert out3.shape == x2.shape and out3.dtype == x2.dtype
    assert jnp.allclose(out3, ref2, atol=1e-5, rtol=1e-5), "two-phase mismatch"

    print("KERNEL_OK")
</pallas_src>

<mosaic_0001>
module attributes {stable_mosaic.version = 11 : i64} {
  func.func @_se_fz_fused_kernel(%arg0: i32, %arg1: memref<1x4x256xf32, #tpu.memory_space<vmem>>, %arg2: memref<4x8xf32, #tpu.memory_space<vmem>>, %arg3: memref<1x8xf32, #tpu.memory_space<vmem>>, %arg4: memref<8x4xf32, #tpu.memory_space<vmem>>, %arg5: memref<1x4xf32, #tpu.memory_space<vmem>>, %arg6: memref<1x4x256xf32, #tpu.memory_space<vmem>>) attributes {dimension_semantics = [#tpu.dimension_semantics<parallel>], iteration_bounds = array<i64: 2>, scalar_prefetch = 0 : i64, scratch_operands = 0 : i64, tpu.core_type = #tpu.core_type<tc>, window_params = [{transform_indices = @transform_0, window_bounds = array<i64: 1, 4, 256>}, {pipeline_mode = #tpu.pipeline_mode<synchronous>, transform_indices = @transform_1, window_bounds = array<i64: 4, 8>}, {pipeline_mode = #tpu.pipeline_mode<synchronous>, transform_indices = @transform_2, window_bounds = array<i64: 1, 8>}, {pipeline_mode = #tpu.pipeline_mode<synchronous>, transform_indices = @transform_3, window_bounds = array<i64: 8, 4>}, {pipeline_mode = #tpu.pipeline_mode<synchronous>, transform_indices = @transform_4, window_bounds = array<i64: 1, 4>}, {transform_indices = @transform_5, window_bounds = array<i64: 1, 4, 256>}]} {
    %c0 = arith.constant 0 : index
    %c0_0 = arith.constant 0 : index
    %c0_1 = arith.constant 0 : index
    %0 = vector.load %arg1[%c0, %c0_0, %c0_1] : memref<1x4x256xf32, #tpu.memory_space<vmem>>, vector<1x4x256xf32>
    %cst = arith.constant dense<0.000000e+00> : vector<1x4xf32>
    %1 = vector.multi_reduction <add>, %0, %cst [2] : vector<1x4x256xf32> to vector<1x4xf32>
    %cst_2 = arith.constant 3.906250e-03 : f32
    %2 = vector.broadcast %cst_2 : f32 to vector<1x4xf32>
    %3 = arith.mulf %1, %2 : vector<1x4xf32>
    %c0_3 = arith.constant 0 : index
    %c0_4 = arith.constant 0 : index
    %4 = vector.load %arg2[%c0_3, %c0_4] : memref<4x8xf32, #tpu.memory_space<vmem>>, vector<4x8xf32>
    %cst_5 = arith.constant dense<0.000000e+00> : vector<1x8xf32>
    %5 = tpu.matmul %3, %4, %cst_5 {dimension_numbers = #tpu.dot_dimension_numbers<[1], [0], [0], [1], [0, 0, 1, 1], [], []>} : vector<1x4xf32>, vector<4x8xf32>, vector<1x8xf32> -> vector<1x8xf32>
    %c0_6 = arith.constant 0 : index
    %c0_7 = arith.constant 0 : index
    %6 = vector.load %arg3[%c0_6, %c0_7] : memref<1x8xf32, #tpu.memory_space<vmem>>, vector<1x8xf32>
    %7 = arith.addf %5, %6 : vector<1x8xf32>
    %cst_8 = arith.constant 0.000000e+00 : f32
    %8 = vector.broadcast %cst_8 : f32 to vector<1x8xf32>
    %9 = arith.maximumf %7, %8 : vector<1x8xf32>
    %c0_9 = arith.constant 0 : index
    %c0_10 = arith.constant 0 : index
    %10 = vector.load %arg4[%c0_9, %c0_10] : memref<8x4xf32, #tpu.memory_space<vmem>>, vector<8x4xf32>
    %cst_11 = arith.constant dense<0.000000e+00> : vector<1x4xf32>
    %11 = tpu.matmul %9, %10, %cst_11 {dimension_numbers = #tpu.dot_dimension_numbers<[1], [0], [0], [1], [0, 0, 1, 1], [], []>} : vector<1x8xf32>, vector<8x4xf32>, vector<1x4xf32> -> vector<1x4xf32>
    %c0_12 = arith.constant 0 : index
    %c0_13 = arith.constant 0 : index
    %12 = vector.load %arg5[%c0_12, %c0_13] : memref<1x4xf32, #tpu.memory_space<vmem>>, vector<1x4xf32>
    %13 = arith.addf %11, %12 : vector<1x4xf32>
    %14 = arith.negf %13 : vector<1x4xf32>
    %15 = math.exp %14 : vector<1x4xf32>
    %cst_14 = arith.constant 1.000000e+00 : f32
    %16 = vector.broadcast %cst_14 : f32 to vector<1x4xf32>
    %17 = arith.addf %16, %15 : vector<1x4xf32>
    %18 = arith.divf %16, %17 : vector<1x4xf32>
    %19 = vector.shape_cast %18 : vector<1x4xf32> to vector<1x4x1xf32>
    %20 = vector.broadcast %19 : vector<1x4x1xf32> to vector<1x4x256xf32>
    %21 = arith.mulf %0, %20 : vector<1x4x256xf32>
    %c0_15 = arith.constant 0 : index
    %c0_16 = arith.constant 0 : index
    %c0_17 = arith.constant 0 : index
    %22 = vector.load %arg6[%c0_15, %c0_16, %c0_17] : memref<1x4x256xf32, #tpu.memory_space<vmem>>, vector<1x4x256xf32>
    tpu.vector_store %arg6[%c0_15, %c0_16, %c0_17], %21 {strides = array<i32>} : memref<1x4x256xf32, #tpu.memory_space<vmem>>, vector<1x4x256xf32>,
    return
  }
  func.func @transform_0(%arg0: i32) -> (i32, i32, i32) {
    %c0_i32 = arith.constant 0 : i32
    %c0_i32_0 = arith.constant 0 : i32
    %c0_i32_1 = arith.constant 0 : i32
    return %arg0, %c0_i32, %c0_i32_0 : i32, i32, i32
  }
  func.func @transform_1(%arg0: i32) -> (i32, i32) {
    %c0_i32 = arith.constant 0 : i32
    %c0_i32_0 = arith.constant 0 : i32
    %c0_i32_1 = arith.constant 0 : i32
    return %c0_i32, %c0_i32_0 : i32, i32
  }
  func.func @transform_2(%arg0: i32) -> (i32, i32) {
    %c0_i32 = arith.constant 0 : i32
    %c0_i32_0 = arith.constant 0 : i32
    %c0_i32_1 = arith.constant 0 : i32
    return %c0_i32, %c0_i32_0 : i32, i32
  }
  func.func @transform_3(%arg0: i32) -> (i32, i32) {
    %c0_i32 = arith.constant 0 : i32
    %c0_i32_0 = arith.constant 0 : i32
    %c0_i32_1 = arith.constant 0 : i32
    return %c0_i32, %c0_i32_0 : i32, i32
  }
  func.func @transform_4(%arg0: i32) -> (i32, i32) {
    %c0_i32 = arith.constant 0 : i32
    %c0_i32_0 = arith.constant 0 : i32
    %c0_i32_1 = arith.constant 0 : i32
    return %c0_i32, %c0_i32_0 : i32, i32
  }
  func.func @transform_5(%arg0: i32) -> (i32, i32, i32) {
    %c0_i32 = arith.constant 0 : i32
    %c0_i32_0 = arith.constant 0 : i32
    %c0_i32_1 = arith.constant 0 : i32
    return %arg0, %c0_i32, %c0_i32_0 : i32, i32, i32
  }
}

</mosaic_0001>

<llo_original>
// kernel: tpu_custom_call.1
$region0: #{tpu_custom_call.1}
  #allocation0 [shape = 'u32[]', space=smem, size = 0x4, offset = 0x4, fixed_abs, tag = 'smem constant byte address 0x4 - core index']
  #allocation1 [shape = 'u32[144,128]{1,0:T(1,128)}', space=vmem, size = 0x12000, scoped, tag = 'internal scratch']
  %s0 = inlined_call_operand.hbm [shape: f32[2,4,256], index: 0, kind: input, shape index: {}]
  %s1 = inlined_call_operand.vmem [shape: f32[4,8], index: 1, kind: input, shape index: {}]
  %s2 = inlined_call_operand.vmem [shape: f32[1,8], index: 2, kind: input, shape index: {}]
  %s3 = inlined_call_operand.vmem [shape: f32[8,4], index: 3, kind: input, shape index: {}]
  %s4 = inlined_call_operand.vmem [shape: f32[1,4], index: 4, kind: input, shape index: {}]
  %s5 = inlined_call_operand.hbm [shape: f32[2,4,256], index: 5, kind: output, shape index: {}]
  %s6 = sld [smem:[#allocation0]]
  $region57: #{tpu_custom_call.1} parent=0
    _
  %s8 = ssub.s32 1, %s6
  %s9 = scalar_select 0, %s8, %s6
  $region1: #{tpu_custom_call.1} parent=0
    #allocation2 [shape = 'u8[8192]{0}', space=vmem, size = 0x2000, scoped, tag = 'input window, operand 0']
    #allocation3 [shape = 's32[2]{0}', space=sflag, size = 0x8, scoped, tag = 'scoped memory for tpu_custom_call.1']
    #allocation4 [shape = 's32[2]{0}', space=sflag, size = 0x8, scoped, tag = 'scoped memory for tpu_custom_call.1']
    #allocation5 [shape = 'u8[8192]{0}', space=vmem, size = 0x2000, scoped, tag = 'output window, operand 0']
    %10 = vsyncpa [#allocation3], 0
    %s11 = scalar_lea.sflag [#allocation3], 1
    %12 = vsyncpa %s11, 0
    %13 = vsyncpa [#allocation4], 0
    %s14 = scalar_lea.sflag [#allocation4], 1
    %15 = vsyncpa %s14, 0
    loop: start=0, step=1, limit=4
    $region2: #{tpu_custom_call.1} parent=1 // loop_pre_header
      _
    $region3: #{tpu_custom_call.1} parent=1 // loop_header
      %s17 = sphi 0, %s21
      %p18 = scmp.ge.s32.totalorder %s17, 4
      %s27 = sphi 0, %s29
      %s30 = sphi 0, %s27
      %s31 = sphi 0, %s30
      %s47 = sphi 0, %s31
      %s51 = sphi 0, %s51
      %s53 = sphi 0, %s51
      %s54 = sphi 0, %s53
      %s68 = sphi 0, %s54
      %s72 = sphi 0, %s72
      %s74 = sphi 0, %s72
      %s75 = sphi 0, %s74
      %s89 = sphi 0, %s75
      %s93 = sphi 0, %s93
      %s95 = sphi 0, %s93
      %s96 = sphi 0, %s95
      %s110 = sphi 0, %s96
      %s114 = sphi 0, %s114
      %s116 = sphi 0, %s114
      %s117 = sphi 0, %s116
      %s131 = sphi 0, %s117
      %s137 = sphi 0, %s139
      %s140 = sphi 0, %s137
      %s141 = sphi 0, %s140
      %s157 = sphi 0, %s141
    $region4: #{tpu_custom_call.1} parent=1 // loop_header_branch
      %20 = sbr.rel (%p18) target = $region8
    $region5: #{tpu_custom_call.1} parent=1 // loop_body
      %s22 = ssub.s32 %s17, 1
      %s23 = ssub.s32 %s17, 2
      %s24 = sadd.s32 %s17, 1
      %s25 = ssub.s32 %s17, %s24
      %p26 = scmp.eq.s32.totalorder %s25, 0
      %s28 = sadd.s32 %s27, 1
      %s29 = scalar_select %p26, %s27, %s28
      %p32 = pneg %p26
      %p33 = scmp.eq.s32.totalorder %s17, 1
      %p34 = por %p32, %p33
      %p35 = scmp.ne.s32.totalorder %s27, %s30
      %p36 = scmp.eq.s32.totalorder %s17, 0
      %p37 = por %p35, %p36
      %p38 = scmp.ne.s32.totalorder %s27, %s30
      %p39 = scmp.eq.s32.totalorder %s22, 1
      %p40 = por %p38, %p39
      %p41 = scmp.ne.s32.totalorder %s30, %s31
      %p42 = scmp.eq.s32.totalorder %s22, 0
      %p43 = por %p41, %p42
      %p44 = scmp.ne.s32.totalorder %s30, %s31
      %p45 = scmp.eq.s32.totalorder %s23, 1
      %p46 = por %p44, %p45
      %p48 = scmp.ne.s32.totalorder %s31, %s47
      %p49 = scmp.eq.s32.totalorder %s23, 0
      %p50 = por %p48, %p49
      %s52 = sadd.s32 %s51, 1
      %p55 = scmp.eq.s32.totalorder %s17, 1
      %p56 = scmp.ne.s32.totalorder %s51, %s53
      %p57 = scmp.eq.s32.totalorder %s17, 0
      %p58 = por %p56, %p57
      %p59 = scmp.ne.s32.totalorder %s51, %s53
      %p60 = scmp.eq.s32.totalorder %s22, 1
      %p61 = por %p59, %p60
      %p62 = scmp.ne.s32.totalorder %s53, %s54
      %p63 = scmp.eq.s32.totalorder %s22, 0
      %p64 = por %p62, %p63
      %p65 = scmp.ne.s32.totalorder %s53, %s54
      %p66 = scmp.eq.s32.totalorder %s23, 1
      %p67 = por %p65, %p66
      %p69 = scmp.ne.s32.totalorder %s54, %s68
      %p70 = scmp.eq.s32.totalorder %s23, 0
      %p71 = por %p69, %p70
      %s73 = sadd.s32 %s72, 1
      %p76 = scmp.eq.s32.totalorder %s17, 1
      %p77 = scmp.ne.s32.totalorder %s72, %s74
      %p78 = scmp.eq.s32.totalorder %s17, 0
      %p79 = por %p77, %p78
      %p80 = scmp.ne.s32.totalorder %s72, %s74
      %p81 = scmp.eq.s32.totalorder %s22, 1
      %p82 = por %p80, %p81
      %p83 = scmp.ne.s32.totalorder %s74, %s75
      %p84 = scmp.eq.s32.totalorder %s22, 0
      %p85 = por %p83, %p84
      %p86 = scmp.ne.s32.totalorder %s74, %s75
      %p87 = scmp.eq.s32.totalorder %s23, 1
      %p88 = por %p86, %p87
      %p90 = scmp.ne.s32.totalorder %s75, %s89
      %p91 = scmp.eq.s32.totalorder %s23, 0
      %p92 = por %p90, %p91
      %s94 = sadd.s32 %s93, 1
      %p97 = scmp.eq.s32.totalorder %s17, 1
      %p98 = scmp.ne.s32.totalorder %s93, %s95
      %p99 = scmp.eq.s32.totalorder %s17, 0
      %p100 = por %p98, %p99
      %p101 = scmp.ne.s32.totalorder %s93, %s95
      %p102 = scmp.eq.s32.totalorder %s22, 1
      %p103 = por %p101, %p102
      %p104 = scmp.ne.s32.totalorder %s95, %s96
      %p105 = scmp.eq.s32.totalorder %s22, 0
      %p106 = por %p104, %p105
      %p107 = scmp.ne.s32.totalorder %s95, %s96
      %p108 = scmp.eq.s32.totalorder %s23, 1
      %p109 = por %p107, %p108
      %p111 = scmp.ne.s32.totalorder %s96, %s110
      %p112 = scmp.eq.s32.totalorder %s23, 0
      %p113 = por %p111, %p112
      %s115 = sadd.s32 %s114, 1
      %p118 = scmp.eq.s32.totalorder %s17, 1
      %p119 = scmp.ne.s32.totalorder %s114, %s116
      %p120 = scmp.eq.s32.totalorder %s17, 0
      %p121 = por %p119, %p120
      %p122 = scmp.ne.s32.totalorder %s114, %s116
      %p123 = scmp.eq.s32.totalorder %s22, 1
      %p124 = por %p122, %p123
      %p125 = scmp.ne.s32.totalorder %s116, %s117
      %p126 = scmp.eq.s32.totalorder %s22, 0
      %p127 = por %p125, %p126
      %p128 = scmp.ne.s32.totalorder %s116, %s117
      %p129 = scmp.eq.s32.totalorder %s23, 1
      %p130 = por %p128, %p129
      %p132 = scmp.ne.s32.totalorder %s117, %s131
      %p133 = scmp.eq.s32.totalorder %s23, 0
      %p134 = por %p132, %p133
      %s135 = ssub.s32 %s17, %s24
      %p136 = scmp.eq.s32.totalorder %s135, 0
      %s138 = sadd.s32 %s137, 1
      %s139 = scalar_select %p136, %s137, %s138
      %p142 = pneg %p136
      %p143 = scmp.eq.s32.totalorder %s17, 1
      %p144 = por %p142, %p143
      %p145 = scmp.ne.s32.totalorder %s137, %s140
      %p146 = scmp.eq.s32.totalorder %s17, 0
      %p147 = por %p145, %p146
      %p148 = scmp.ne.s32.totalorder %s137, %s140
      %p149 = scmp.eq.s32.totalorder %s22, 1
      %p150 = por %p148, %p149
      %p151 = scmp.ne.s32.totalorder %s140, %s141
      %p152 = scmp.eq.s32.totalorder %s22, 0
      %p153 = por %p151, %p152
      %p154 = scmp.ne.s32.totalorder %s140, %s141
      %p155 = scmp.eq.s32.totalorder %s23, 1
      %p156 = por %p154, %p155
      %p158 = scmp.ne.s32.totalorder %s141, %s157
      %p159 = scmp.eq.s32.totalorder %s23, 0
      %p160 = por %p158, %p159
      %p161 = scmp.le.s32.totalorder 1, %s17
      %p162 = scmp.lt.s32.totalorder %s17, 3
      %p163 = pnand %p161, %p162
      %p164 = pneg %p163
      // Predicated region
      $region9: #{tpu_custom_call.1} parent=5 // pred_check
        _
      $region10: #{tpu_custom_call.1} parent=5 // pred_check_branch
        %166 = sbr.rel (%p163) target = $region12
      $region11: #{tpu_custom_call.1} parent=5 // pred_region
        %s167 = ssub.s32 %s17, 1
        // Predicated region
        $region13: #{tpu_custom_call.1} parent=11 // pred_check
          %p168 = pneg %p64
        $region14: #{tpu_custom_call.1} parent=11 // pred_check_branch
          %170 = sbr.rel (%p168) target = $region16
        $region15: #{tpu_custom_call.1} parent=11 // pred_region
          _
        $region16: #{tpu_custom_call.1} parent=11 // pred_fallthru
          _
        // Predicated region
        $region17: #{tpu_custom_call.1} parent=11 // pred_check
          %p171 = pneg %p85
        $region18: #{tpu_custom_call.1} parent=11 // pred_check_branch
          %173 = sbr.rel (%p171) target = $region20
        $region19: #{tpu_custom_call.1} parent=11 // pred_region
          _
        $region20: #{tpu_custom_call.1} parent=11 // pred_fallthru
          _
        // Predicated region
        $region21: #{tpu_custom_call.1} parent=11 // pred_check
          %p174 = pneg %p106
        $region22: #{tpu_custom_call.1} parent=11 // pred_check_branch
          %176 = sbr.rel (%p174) target = $region24
        $region23: #{tpu_custom_call.1} parent=11 // pred_region
          _
        $region24: #{tpu_custom_call.1} parent=11 // pred_fallthru
          _
        // Predicated region
        $region25: #{tpu_custom_call.1} parent=11 // pred_check
          %p177 = pneg %p127
        $region26: #{tpu_custom_call.1} parent=11 // pred_check_branch
          %179 = sbr.rel (%p177) target = $region28
        $region27: #{tpu_custom_call.1} parent=11 // pred_region
          _
        $region28: #{tpu_custom_call.1} parent=11 // pred_fallthru
          _
      $region12: #{tpu_custom_call.1} parent=5 // pred_fallthru
        _
      %p180 = scmp.lt.s32.totalorder %s17, 2
      // Predicated region
      $region29: #{tpu_custom_call.1} parent=5 // pred_check
        %p181 = pneg %p180
      $region30: #{tpu_custom_call.1} parent=5 // pred_check_branch
        %183 = sbr.rel (%p181) target = $region32
      $region31: #{tpu_custom_call.1} parent=5 // pred_region
        // Predicated region
        $region33: #{tpu_custom_call.1} parent=31 // pred_check
          %p184 = pneg %p37
        $region34: #{tpu_custom_call.1} parent=31 // pred_check_branch
          %186 = sbr.rel (%p184) target = $region36
        $region35: #{tpu_custom_call.1} parent=31 // pred_region
          %s187 = sand.u32 %s27, 1
          %s188 = scalar_lea.sflag [#allocation3], %s187
          %s189 = sand.u32 %s27, 1
          %s190 = smul.addr %s189, 8
          %s191 = scalar_lea.vmem [#allocation2], %s190
          %s193 = ssub.s32 128, 128
          %194 = vsyncadd %s188, %s193
          %s195 = smul.addr %s17, 2
          %s196 = smul.addr %s195, 64
          %s197 = scalar_lea.hbm %s0, %s196
          %s199 = sshll.u32 %s191, 4
          %s200 = int_to_ptr.vmem [resolvable:$true] %s199
          %202 = dma.hbm_to_vmem [thread:$0]  %s197, 128, %s200, %s188
        $region36: #{tpu_custom_call.1} parent=31 // pred_fallthru
          _
      $region32: #{tpu_custom_call.1} parent=5 // pred_fallthru
        _
      %p203 = scmp.le.s32.totalorder 1, %s17
      %p204 = scmp.lt.s32.totalorder %s17, 3
      %p205 = pnand %p203, %p204
      %p206 = pneg %p205
      // Predicated region
      $region37: #{tpu_custom_call.1} parent=5 // pred_check
        _
      $region38: #{tpu_custom_call.1} parent=5 // pred_check_branch
        %208 = sbr.rel (%p205) target = $region40
      $region39: #{tpu_custom_call.1} parent=5 // pred_region
        %s209 = ssub.s32 %s17, 1
        %s210 = sand.u32 %s30, 1
        %s211 = scalar_lea.sflag [#allocation3], %s210
        %s212 = sand.u32 %s30, 1
        %s213 = smul.addr %s212, 8
        %s214 = scalar_lea.vmem [#allocation2], %s213
        // Predicated region
        $region41: #{tpu_custom_call.1} parent=39 // pred_check
          %p215 = pneg %p43
        $region42: #{tpu_custom_call.1} parent=39 // pred_check_branch
          %217 = sbr.rel (%p215) target = $region44
        $region43: #{tpu_custom_call.1} parent=39 // pred_region
          %218 = dma.done %s211, 128
        $region44: #{tpu_custom_call.1} parent=39 // pred_fallthru
          _
        %s219 = sand.u32 %s30, 1
        %s220 = scalar_lea.sflag [#allocation3], %s219
        %s221 = sand.u32 %s30, 1
        %s222 = smul.addr %s221, 8
        %s223 = scalar_lea.vmem [#allocation2], %s222
        %p224 = pneg %p43
        %p225 = pneg %p40
        %p226 = pneg %p64
        %p227 = pneg %p61
        %p228 = pneg %p85
        %p229 = pneg %p82
        %p230 = pneg %p106
        %p231 = pneg %p103
        %p232 = pneg %p127
        %p233 = pneg %p124
        %p234 = pneg %p153
        %p235 = pneg %p150
        %s236 = sand.u32 %s140, 1
        %s237 = scalar_lea.sflag [#allocation4], %s236
        %s238 = sand.u32 %s140, 1
        %s239 = smul.addr %s238, 8
        %s240 = scalar_lea.vmem [#allocation5], %s239
        %v241 = vld [vmem:[%s214] sm:$0xff]
        %v243 = vcombine.high %v241, %v241
        %vm245 = vcmask 1043456
        %v246 = vsel %vm245, %v241, 0.0
        %v247 = vsel %vm245, %v243, 0.0
        %v248 = vadd.f32 %v246, %v247
        %249 = vadd.xlane.f32.xlu0 %v248
        %v250 = vpop.xlane.xlu0 %249
        %v251 = vmul.f32 %v250, 0.00390625
        %v252 = vld [vmem:[%s1] sm:$0xf]
        %v253 = vld [vmem:[%s2] sm:$0x1]
        %v255 = vlaneseq
        %v256 = vand.u32 %v255, 127
        %v257 = vlaneseq
        %v258 = vshrl.u32 %v257, 7
        %v259 = vsub.s32 %v256, %v258
        %v260 = vrot.slane %v251, %v259
        %vm261 = vcmask 31744
        %v262 = vsel %vm261, %v260, 0
        %v265 = vsel %vm245, %v252, 0
        %267 = vmatprep.subr.mxu0 0.0
        %268 = vmatpush1.msra.mxu0 %v265
        %269 = vmatprep.subr.mxu0 0.0
        %270 = vmatpush1.msra.mxu0 0.0
        %271 = vmatprep.subr.mxu0 0.0
        %272 = vmatpush1.msra.mxu0 0.0
        %273 = vmatprep.subr.mxu0 0.0
        %274 = vmatpush1.msra.mxu0 0.0
        %275 = vmatprep.subr.mxu0 0.0
        %276 = vmatpush1.msra.mxu0 0.0
        %277 = vmatprep.subr.mxu0 0.0
        %278 = vmatpush1.msra.mxu0 0.0
        %279 = vmatprep.subr.mxu0 0.0
        %280 = vmatpush1.msra.mxu0 0.0
        %281 = vmatprep.subr.mxu0 0.0
        %282 = vmatpush1.msra.mxu0 0.0
        %283 = vmatprep.subr.mxu0 0.0
        %284 = vmatpush1.msra.mxu0 0.0
        %285 = vmatprep.subr.mxu0 0.0
        %286 = vmatpush1.msra.mxu0 0.0
        %287 = vmatprep.subr.mxu0 0.0
        %288 = vmatpush1.msra.mxu0 0.0
        %289 = vmatprep.subr.mxu0 0.0
        %290 = vmatpush1.msra.mxu0 0.0
        %291 = vmatprep.subr.mxu0 0.0
        %292 = vmatpush1.msra.mxu0 0.0
        %293 = vmatprep.subr.mxu0 0.0
        %294 = vmatpush1.msra.mxu0 0.0
        %295 = vmatprep.subr.mxu0 0.0
        %296 = vmatpush1.msra.mxu0 0.0
        %297 = vmatprep.subr.mxu0 0.0
        %298 = vmatpush1.msra.mxu0 0.0
        %299 = vmatprep.subr.mxu0 0.0
        %300 = vmatpush1.msra.mxu0 0.0
        %301 = vmatprep.subr.mxu0 0.0
        %302 = vmatpush1.msra.mxu0 0.0
        %303 = vmatprep.subr.mxu0 0.0
        %304 = vmatpush1.msra.mxu0 0.0
        %305 = vmatprep.subr.mxu0 0.0
        %306 = vmatpush1.msra.mxu0 0.0
        %307 = vmatprep.subr.mxu0 0.0
        %308 = vmatpush1.msra.mxu0 0.0
        %309 = vmatprep.subr.mxu0 0.0
        %310 = vmatpush1.msra.mxu0 0.0
        %311 = vmatprep.subr.mxu0 0.0
        %312 = vmatpush1.msra.mxu0 0.0
        %313 = vmatprep.subr.mxu0 0.0
        %314 = vmatpush1.msra.mxu0 0.0
        %315 = vmatprep.subr.mxu0 0.0
        %316 = vmatpush1.msra.mxu0 0.0
        %317 = vmatprep.subr.mxu0 0.0
        %318 = vmatpush1.msra.mxu0 0.0
        %319 = vmatprep.subr.mxu0 0.0
        %320 = vmatpush1.msra.mxu0 0.0
        %321 = vmatprep.subr.mxu0 0.0
        %322 = vmatpush1.msra.mxu0 0.0
        %323 = vmatprep.subr.mxu0 0.0
        %324 = vmatpush1.msra.mxu0 0.0
        %325 = vmatprep.subr.mxu0 0.0
        %326 = vmatpush1.msra.mxu0 0.0
        %327 = vmatprep.subr.mxu0 0.0
        %328 = vmatpush1.msra.mxu0 0.0
        %329 = vmatprep.subr.mxu0 0.0
        %330 = vmatpush1.msra.mxu0 0.0
        %331 = vmatprep.mubr.f32.mxu0 0.0
        %332 = vmatmul.mubr.f32.gmra.mrb[0].mxu0 %v262
        %v333 = vpop.f32.mrb[0].mxu0
        %v334 = vadd.f32 %v253, %v333
        %v335 = vpop.f32.mrb[0].mxu0
        %336 = vdwg.mxu0
        %v337 = vmax.f32 %v334, 0.0
        %v338 = vld [vmem:[%s3] sm:$0xff]
        %v339 = vld [vmem:[%s4] sm:$0x1]
        %vm340 = vcmask 64512
        %v342 = vsel %vm340, %v337, 0
        %344 = vmatprep.subr.mxu0 0.0
        %345 = vmatpush1.msra.mxu0 %v338
        %346 = vmatprep.subr.mxu0 0.0
        %347 = vmatpush1.msra.mxu0 0.0
        %348 = vmatprep.subr.mxu0 0.0
        %349 = vmatpush1.msra.mxu0 0.0
        %350 = vmatprep.subr.mxu0 0.0
        %351 = vmatpush1.msra.mxu0 0.0
        %352 = vmatprep.subr.mxu0 0.0
        %353 = vmatpush1.msra.mxu0 0.0
        %354 = vmatprep.subr.mxu0 0.0
        %355 = vmatpush1.msra.mxu0 0.0
        %356 = vmatprep.subr.mxu0 0.0
        %357 = vmatpush1.msra.mxu0 0.0
        %358 = vmatprep.subr.mxu0 0.0
        %359 = vmatpush1.msra.mxu0 0.0
        %360 = vmatprep.subr.mxu0 0.0
        %361 = vmatpush1.msra.mxu0 0.0
        %362 = vmatprep.subr.mxu0 0.0
        %363 = vmatpush1.msra.mxu0 0.0
        %364 = vmatprep.subr.mxu0 0.0
        %365 = vmatpush1.msra.mxu0 0.0
        %366 = vmatprep.subr.mxu0 0.0
        %367 = vmatpush1.msra.mxu0 0.0
        %368 = vmatprep.subr.mxu0 0.0
        %369 = vmatpush1.msra.mxu0 0.0
        %370 = vmatprep.subr.mxu0 0.0
        %371 = vmatpush1.msra.mxu0 0.0
        %372 = vmatprep.subr.mxu0 0.0
        %373 = vmatpush1.msra.mxu0 0.0
        %374 = vmatprep.subr.mxu0 0.0
        %375 = vmatpush1.msra.mxu0 0.0
        %376 = vmatprep.subr.mxu0 0.0
        %377 = vmatpush1.msra.mxu0 0.0
        %378 = vmatprep.subr.mxu0 0.0
        %379 = vmatpush1.msra.mxu0 0.0
        %380 = vmatprep.subr.mxu0 0.0
        %381 = vmatpush1.msra.mxu0 0.0
        %382 = vmatprep.subr.mxu0 0.0
        %383 = vmatpush1.msra.mxu0 0.0
        %384 = vmatprep.subr.mxu0 0.0
        %385 = vmatpush1.msra.mxu0 0.0
        %386 = vmatprep.subr.mxu0 0.0
        %387 = vmatpush1.msra.mxu0 0.0
        %388 = vmatprep.subr.mxu0 0.0
        %389 = vmatpush1.msra.mxu0 0.0
        %390 = vmatprep.subr.mxu0 0.0
        %391 = vmatpush1.msra.mxu0 0.0
        %392 = vmatprep.subr.mxu0 0.0
        %393 = vmatpush1.msra.mxu0 0.0
        %394 = vmatprep.subr.mxu0 0.0
        %395 = vmatpush1.msra.mxu0 0.0
        %396 = vmatprep.subr.mxu0 0.0
        %397 = vmatpush1.msra.mxu0 0.0
        %398 = vmatprep.subr.mxu0 0.0
        %399 = vmatpush1.msra.mxu0 0.0
        %400 = vmatprep.subr.mxu0 0.0
        %401 = vmatpush1.msra.mxu0 0.0
        %402 = vmatprep.subr.mxu0 0.0
        %403 = vmatpush1.msra.mxu0 0.0
        %404 = vmatprep.subr.mxu0 0.0
        %405 = vmatpush1.msra.mxu0 0.0
        %406 = vmatprep.subr.mxu0 0.0
        %407 = vmatpush1.msra.mxu0 0.0
        %408 = vmatprep.mubr.f32.mxu0 0.0
        %409 = vmatmul.mubr.f32.gmra.mrb[0].mxu0 %v342
        %v410 = vpop.f32.mrb[0].mxu0
        %v411 = vadd.f32 %v339, %v410
        %v412 = vpop.f32.mrb[0].mxu0
        %413 = vdwg.mxu0
        %v414 = vxor.u32 %v411, 2147483648
        %v415 = vmul.f32 %v414, 1.442695
        %v416 = vpow.pop %v415
        %v417 = vadd.f32 %v416, 1.0
        %v418 = vrcp.pop %v417
        %v419 = vmul.f32 1.0, %v418
        %v420 = vlaneseq
        %v421 = vshrl.u32 %v420, 7
        %v422 = vsub.s32 0, %v421
        %v423 = vrot.slane %v419, %v422
        %425 = vbcast.lane.b32.xlu0 %v423, 256
        %v426 = vpop.permute.xlu0 %425
        %v429 = vunpack.c.l.s4 839922192
        %v430 = vunpack.c.0.s8 %v429
        %v431 = vlaneseq
        %v432 = vshrl.u32 %v431, 7
        %v433 = vsub.s32 %v430, %v432
        %v434 = vrot.slane %v426, %v433
        %v436 = vmul.f32 %v241, %v434
        %437 = vst [vmem:[%s240] sm:$0xff] %v436
        %s438 = sand.u32 %s140, 1
        %s439 = scalar_lea.sflag [#allocation4], %s438
        %s440 = sand.u32 %s140, 1
        %s441 = smul.addr %s440, 8
        %s442 = scalar_lea.vmem [#allocation5], %s441
        // Predicated region
        $region45: #{tpu_custom_call.1} parent=39 // pred_check
          %p443 = pneg %p150
        $region46: #{tpu_custom_call.1} parent=39 // pred_check_branch
          %445 = sbr.rel (%p443) target = $region48
        $region47: #{tpu_custom_call.1} parent=39 // pred_region
          %s447 = ssub.s32 128, 128
          %448 = vsyncadd %s439, %s447
          %s449 = smul.addr %s22, 2
          %s450 = smul.addr %s449, 64
          %s451 = scalar_lea.hbm %s5, %s450
          %s453 = sshll.u32 %s442, 4
          %s454 = int_to_ptr.vmem [resolvable:$true] %s453
          %456 = dma.vmem_to_hbm [thread:$0]  %s454, 128, %s451, %s439
        $region48: #{tpu_custom_call.1} parent=39 // pred_fallthru
          _
      $region40: #{tpu_custom_call.1} parent=5 // pred_fallthru
        _
      %p457 = scmp.le.s32.totalorder 2, %s17
      // Predicated region
      $region49: #{tpu_custom_call.1} parent=5 // pred_check
        %p458 = pneg %p457
      $region50: #{tpu_custom_call.1} parent=5 // pred_check_branch
        %460 = sbr.rel (%p458) target = $region52
      $region51: #{tpu_custom_call.1} parent=5 // pred_region
        %s461 = ssub.s32 %s17, 2
        // Predicated region
        $region53: #{tpu_custom_call.1} parent=51 // pred_check
          %p462 = pneg %p156
        $region54: #{tpu_custom_call.1} parent=51 // pred_check_branch
          %464 = sbr.rel (%p462) target = $region56
        $region55: #{tpu_custom_call.1} parent=51 // pred_region
          %s465 = sand.u32 %s141, 1
          %s466 = scalar_lea.sflag [#allocation4], %s465
          %s467 = sand.u32 %s141, 1
          %s468 = smul.addr %s467, 8
          %s469 = scalar_lea.vmem [#allocation5], %s468
          %470 = dma.done %s466, 128
        $region56: #{tpu_custom_call.1} parent=51 // pred_fallthru
          _
      $region52: #{tpu_custom_call.1} parent=5 // pred_fallthru
        _
    $region6: #{tpu_custom_call.1} parent=1 // loop_footer
      %s21 = sadd.s32 1, %s17
    $region7: #{tpu_custom_call.1} parent=1 // loop_footer_branch
      %16 = sbr.rel target = $region3
    $region8: #{tpu_custom_call.1} parent=1 // loop_exit
      _
    %471 = vsyncpa [#allocation3], 1
    %s472 = scalar_lea.sflag [#allocation3], 1
    %473 = vsyncpa %s472, 1
    %474 = vsyncpa [#allocation4], 1
    %s475 = scalar_lea.sflag [#allocation4], 1
    %476 = vsyncpa %s475, 1

</llo_original>
